<compile_context>
chip_gen: v6e
topology: v6e:2x2x1
jax: 0.10.0
libtpu: 0.0.40
codegen_flags: <defaults>
</compile_context>

<pallas_src>
import functools

import jax
import jax.numpy as jnp
from jax.experimental import pallas as pl
from jax.experimental.pallas import tpu as pltpu


def _round_up(v, m):
    return ((v + m - 1) // m) * m


def _mpn_kernel(x_ref, w1_ref, w2_ref, out_ref):
    # x_ref : (bb, Din_p)        w1_ref: (Din_p, PW_p)   w2_ref: (PW_p, Dout_p)
    # Both matmuls run on the MXU with f32 accumulation.
    h = jnp.dot(x_ref[...], w1_ref[...], preferred_element_type=jnp.float32)
    y = jnp.dot(h.astype(w2_ref.dtype), w2_ref[...],
                preferred_element_type=jnp.float32)
    out_ref[...] = y.astype(out_ref.dtype)


@functools.partial(jax.jit, static_argnames=("compute_dtype", "block_b"))
def multipathway_net_forward(x, w1_stack, w2_stack, *,
                             compute_dtype=jnp.float32, block_b=128):
    """Forward pass of MultipathwayNet (idx=-1, depth=2, bias=False, linear).

    x:        (B, Din)
    w1_stack: (P, width, Din)   -- torch Linear.weight layout [out, in]
    w2_stack: (P, Dout, width)
    returns:  (B, Dout) float32
    """
    B, Din = x.shape
    P, width, Din_w = w1_stack.shape
    assert Din_w == Din
    Dout = w2_stack.shape[1]
    assert w2_stack.shape == (P, Dout, width)
    PW = P * width

    # --- Fuse pathways + pre-transpose weights to (K, N) layout (one-time
    #     layout plumbing outside the kernel). -------------------------------
    # W1cat.T : (Din, P*width); column p*width + j == W1_p[j, :]
    w1t = jnp.transpose(w1_stack, (2, 0, 1)).reshape(Din, PW)
    # W2cat.T : (P*width, Dout); row p*width + j == W2_p[:, j]
    w2t = jnp.transpose(w2_stack, (0, 2, 1)).reshape(PW, Dout)

    # --- Pad everything to lane-dense (8, 128) multiples. Zero padding is
    #     exact: padded K rows/cols contribute 0, padded M/N rows/cols are
    #     sliced off afterwards. ---------------------------------------------
    Din_p = _round_up(Din, 128)
    PW_p = _round_up(PW, 128)
    Dout_p = _round_up(Dout, 128)

    bb = min(_round_up(B, 8), _round_up(block_b, 8))   # batch tile (sublane mult of 8)
    B_p = _round_up(B, bb)

    x_p = jnp.zeros((B_p, Din_p), compute_dtype).at[:B, :Din].set(
        x.astype(compute_dtype))
    w1_p = jnp.zeros((Din_p, PW_p), compute_dtype).at[:Din, :PW].set(
        w1t.astype(compute_dtype))
    w2_p = jnp.zeros((PW_p, Dout_p), compute_dtype).at[:PW, :Dout].set(
        w2t.astype(compute_dtype))

    grid_b = B_p // bb

    out_p = pl.pallas_call(
        _mpn_kernel,
        out_shape=jax.ShapeDtypeStruct((B_p, Dout_p), jnp.float32),
        grid_spec=pltpu.PrefetchScalarGridSpec(
            num_scalar_prefetch=0,
            grid=(grid_b,),
            in_specs=[
                pl.BlockSpec((bb, Din_p), lambda i: (i, 0)),
                # Weights: full, resident blocks (same block index every step).
                pl.BlockSpec((Din_p, PW_p), lambda i: (0, 0)),
                pl.BlockSpec((PW_p, Dout_p), lambda i: (0, 0)),
            ],
            out_specs=pl.BlockSpec((bb, Dout_p), lambda i: (i, 0)),
        ),
        compiler_params=pltpu.CompilerParams(
            # Batch tiles are independent -> both v7x TensorCores can share them.
            dimension_semantics=("parallel",),
        ),
    )(x_p, w1_p, w2_p)

    return out_p[:B, :Dout]


def init_multipathway_params(key, input_dim, output_dim, num_pathways=2,
                             width=32, eps=0.01, dtype=jnp.float32):
    """Matches torch init: weight = randn(out, in) * eps, bias=False."""
    k1, k2 = jax.random.split(key)
    w1_stack = jax.random.normal(k1, (num_pathways, width, input_dim), dtype) * eps
    w2_stack = jax.random.normal(k2, (num_pathways, output_dim, width), dtype) * eps
    return w1_stack, w2_stack


def _reference_forward(x, w1_stack, w2_stack):
    # Pure-JAX reference of MultipathwayNet.forward (idx=-1, depth=2, no bias/nonlin).
    out = jnp.zeros((x.shape[0], w2_stack.shape[1]), jnp.float32)
    for p in range(w1_stack.shape[0]):
        h = x @ w1_stack[p].T
        out = out + h @ w2_stack[p].T
    return out


if __name__ == "__main__":
    # Small shapes consistent with the module: num_pathways=2, depth=2.
    batch = 8
    input_dim = 16
    output_dim = 8
    width = 32          # stands in for the module's default width=1000
    num_pathways = 2
    eps = 0.01

    key = jax.random.PRNGKey(0)
    kx, kw = jax.random.split(key)
    x = jax.random.normal(kx, (batch, input_dim), jnp.float32)
    w1_stack, w2_stack = init_multipathway_params(
        kw, input_dim, output_dim, num_pathways=num_pathways, width=width, eps=eps)

    ref = _reference_forward(x, w1_stack, w2_stack)

    # f32 operands: exact-precision check against the reference.
    out_f32 = multipathway_net_forward(x, w1_stack, w2_stack,
                                       compute_dtype=jnp.float32)
    out_f32 = jax.block_until_ready(out_f32)
    assert out_f32.shape == (batch, output_dim)
    assert jnp.allclose(out_f32, ref, atol=1e-5, rtol=1e-5), "f32 mismatch vs reference"

    # bf16 operands (MXU fast path on v6e/v7x), f32 accumulation: loose check.
    out_bf16 = multipathway_net_forward(x, w1_stack, w2_stack,
                                        compute_dtype=jnp.bfloat16)
    out_bf16 = jax.block_until_ready(out_bf16)
    assert jnp.allclose(out_bf16, ref, atol=2e-4, rtol=5e-2), "bf16 mismatch vs reference"

    print("KERNEL_OK")
</pallas_src>

<mosaic_0001>
module attributes {stable_mosaic.version = 11 : i64} {
  func.func @_mpn_kernel(%arg0: i32, %arg1: memref<8x128xf32, #tpu.memory_space<vmem>>, %arg2: memref<128x128xf32, #tpu.memory_space<vmem>>, %arg3: memref<128x128xf32, #tpu.memory_space<vmem>>, %arg4: memref<8x128xf32, #tpu.memory_space<vmem>>) attributes {dimension_semantics = [#tpu.dimension_semantics<parallel>], iteration_bounds = array<i64: 1>, scalar_prefetch = 0 : i64, scratch_operands = 0 : i64, tpu.core_type = #tpu.core_type<tc>, window_params = [{transform_indices = @transform_0, window_bounds = array<i64: 8, 128>}, {pipeline_mode = #tpu.pipeline_mode<synchronous>, transform_indices = @transform_1, window_bounds = array<i64: 128, 128>}, {pipeline_mode = #tpu.pipeline_mode<synchronous>, transform_indices = @transform_2, window_bounds = array<i64: 128, 128>}, {transform_indices = @transform_3, window_bounds = array<i64: 8, 128>}]} {
    %c0 = arith.constant 0 : index
    %c0_0 = arith.constant 0 : index
    %0 = vector.load %arg1[%c0, %c0_0] : memref<8x128xf32, #tpu.memory_space<vmem>>, vector<8x128xf32>
    %c0_1 = arith.constant 0 : index
    %c0_2 = arith.constant 0 : index
    %1 = vector.load %arg2[%c0_1, %c0_2] : memref<128x128xf32, #tpu.memory_space<vmem>>, vector<128x128xf32>
    %cst = arith.constant dense<0.000000e+00> : vector<8x128xf32>
    %2 = tpu.matmul %0, %1, %cst {dimension_numbers = #tpu.dot_dimension_numbers<[1], [0], [0], [1], [0, 0, 1, 1], [], []>} : vector<8x128xf32>, vector<128x128xf32>, vector<8x128xf32> -> vector<8x128xf32>
    %c0_3 = arith.constant 0 : index
    %c0_4 = arith.constant 0 : index
    %3 = vector.load %arg3[%c0_3, %c0_4] : memref<128x128xf32, #tpu.memory_space<vmem>>, vector<128x128xf32>
    %cst_5 = arith.constant dense<0.000000e+00> : vector<8x128xf32>
    %4 = tpu.matmul %2, %3, %cst_5 {dimension_numbers = #tpu.dot_dimension_numbers<[1], [0], [0], [1], [0, 0, 1, 1], [], []>} : vector<8x128xf32>, vector<128x128xf32>, vector<8x128xf32> -> vector<8x128xf32>
    %c0_6 = arith.constant 0 : index
    %c0_7 = arith.constant 0 : index
    %5 = vector.load %arg4[%c0_6, %c0_7] : memref<8x128xf32, #tpu.memory_space<vmem>>, vector<8x128xf32>
    tpu.vector_store %arg4[%c0_6, %c0_7], %4 {strides = array<i32>} : memref<8x128xf32, #tpu.memory_space<vmem>>, vector<8x128xf32>,
    return
  }
  func.func @transform_0(%arg0: i32) -> (i32, i32) {
    %c0_i32 = arith.constant 0 : i32
    %c0_i32_0 = arith.constant 0 : i32
    return %arg0, %c0_i32 : i32, i32
  }
  func.func @transform_1(%arg0: i32) -> (i32, i32) {
    %c0_i32 = arith.constant 0 : i32
    %c0_i32_0 = arith.constant 0 : i32
    %c0_i32_1 = arith.constant 0 : i32
    return %c0_i32, %c0_i32_0 : i32, i32
  }
  func.func @transform_2(%arg0: i32) -> (i32, i32) {
    %c0_i32 = arith.constant 0 : i32
    %c0_i32_0 = arith.constant 0 : i32
    %c0_i32_1 = arith.constant 0 : i32
    return %c0_i32, %c0_i32_0 : i32, i32
  }
  func.func @transform_3(%arg0: i32) -> (i32, i32) {
    %c0_i32 = arith.constant 0 : i32
    %c0_i32_0 = arith.constant 0 : i32
    return %arg0, %c0_i32 : i32, i32
  }
}

</mosaic_0001>

<llo_original>
// kernel: multipathway_net_forward.1
$region0: #{multipathway_net_forward.1}
  #allocation0 [shape = 'u32[]', space=smem, size = 0x4, offset = 0x4, fixed_abs, tag = 'smem constant byte address 0x4 - core index']
  #allocation1 [shape = 'u32[144,128]{1,0:T(1,128)}', space=vmem, size = 0x12000, scoped, tag = 'internal scratch']
  %s0 = inlined_call_operand.vmem [shape: f32[8,128], index: 0, kind: input, shape index: {}]
  %s1 = inlined_call_operand.vmem [shape: f32[128,128], index: 1, kind: input, shape index: {}]
  %s2 = inlined_call_operand.vmem [shape: f32[128,128], index: 2, kind: input, shape index: {}]
  %s3 = inlined_call_operand.hbm [shape: f32[8,128], index: 3, kind: output, shape index: {}]
  %s4 = sld [smem:[#allocation0]]
  $region22: #{multipathway_net_forward.1} parent=0
    _
  %s6 = ssub.s32 1, %s4
  %s7 = scalar_select 0, %s6, %s4
  $region1: #{multipathway_net_forward.1} parent=0
    #allocation2 [shape = 'u8[4096]{0}', space=vmem, size = 0x1000, scoped, tag = 'output window, operand 0, single buffered']
    #allocation3 [shape = 's32[1]{0}', space=sflag, size = 0x4, scoped, tag = 'scoped memory for multipathway_net_forward.1']
    %8 = vsyncpa [#allocation3], 0
    // Predicated region
    $region2: #{multipathway_net_forward.1} parent=1 // pred_check
      _
    $region3: #{multipathway_net_forward.1} parent=1 // pred_check_branch
      %10 = sbr.rel (0) target = $region5
    $region4: #{multipathway_net_forward.1} parent=1 // pred_region
      _
    $region5: #{multipathway_net_forward.1} parent=1 // pred_fallthru
      _
    // Predicated region
    $region6: #{multipathway_net_forward.1} parent=1 // pred_check
      _
    $region7: #{multipathway_net_forward.1} parent=1 // pred_check_branch
      %12 = sbr.rel (0) target = $region9
    $region8: #{multipathway_net_forward.1} parent=1 // pred_region
      _
    $region9: #{multipathway_net_forward.1} parent=1 // pred_fallthru
      _
    // Predicated region
    $region10: #{multipathway_net_forward.1} parent=1 // pred_check
      _
    $region11: #{multipathway_net_forward.1} parent=1 // pred_check_branch
      %14 = sbr.rel (0) target = $region13
    $region12: #{multipathway_net_forward.1} parent=1 // pred_region
      _
    $region13: #{multipathway_net_forward.1} parent=1 // pred_fallthru
      _
    %v15 = vld [vmem:[%s0] sm:$0xff]
    %v16 = vld [vmem:[%s1] sm:$0xff]
    %v17 = vld [vmem:[%s1 + $0x8] sm:$0xff]
    %v18 = vld [vmem:[%s1 + $0x10] sm:$0xff]
    %v19 = vld [vmem:[%s1 + $0x18] sm:$0xff]
    %v20 = vld [vmem:[%s1 + $0x20] sm:$0xff]
    %v21 = vld [vmem:[%s1 + $0x28] sm:$0xff]
    %v22 = vld [vmem:[%s1 + $0x30] sm:$0xff]
    %v23 = vld [vmem:[%s1 + $0x38] sm:$0xff]
    %v24 = vld [vmem:[%s1 + $0x40] sm:$0xff]
    %v25 = vld [vmem:[%s1 + $0x48] sm:$0xff]
    %v26 = vld [vmem:[%s1 + $0x50] sm:$0xff]
    %v27 = vld [vmem:[%s1 + $0x58] sm:$0xff]
    %v28 = vld [vmem:[%s1 + $0x60] sm:$0xff]
    %v29 = vld [vmem:[%s1 + $0x68] sm:$0xff]
    %v30 = vld [vmem:[%s1 + $0x70] sm:$0xff]
    %v31 = vld [vmem:[%s1 + $0x78] sm:$0xff]
    %32 = vmatprep.subr.mxu0 0.0
    %33 = vmatpush1.msra.mxu0 %v31
    %34 = vmatprep.subr.mxu0 0.0
    %35 = vmatpush1.msra.mxu0 %v30
    %36 = vmatprep.subr.mxu0 0.0
    %37 = vmatpush1.msra.mxu0 %v29
    %38 = vmatprep.subr.mxu0 0.0
    %39 = vmatpush1.msra.mxu0 %v28
    %40 = vmatprep.subr.mxu0 0.0
    %41 = vmatpush1.msra.mxu0 %v27
    %42 = vmatprep.subr.mxu0 0.0
    %43 = vmatpush1.msra.mxu0 %v26
    %44 = vmatprep.subr.mxu0 0.0
    %45 = vmatpush1.msra.mxu0 %v25
    %46 = vmatprep.subr.mxu0 0.0
    %47 = vmatpush1.msra.mxu0 %v24
    %48 = vmatprep.subr.mxu0 0.0
    %49 = vmatpush1.msra.mxu0 %v23
    %50 = vmatprep.subr.mxu0 0.0
    %51 = vmatpush1.msra.mxu0 %v22
    %52 = vmatprep.subr.mxu0 0.0
    %53 = vmatpush1.msra.mxu0 %v21
    %54 = vmatprep.subr.mxu0 0.0
    %55 = vmatpush1.msra.mxu0 %v20
    %56 = vmatprep.subr.mxu0 0.0
    %57 = vmatpush1.msra.mxu0 %v19
    %58 = vmatprep.subr.mxu0 0.0
    %59 = vmatpush1.msra.mxu0 %v18
    %60 = vmatprep.subr.mxu0 0.0
    %61 = vmatpush1.msra.mxu0 %v17
    %62 = vmatprep.subr.mxu0 0.0
    %63 = vmatpush1.msra.mxu0 %v16
    %64 = vmatprep.subr.mxu0 0.0
    %65 = vmatpush2.msra.mxu0 0.0
    %66 = vmatprep.subr.mxu0 0.0
    %67 = vmatpush2.msra.mxu0 0.0
    %68 = vmatprep.subr.mxu0 0.0
    %69 = vmatpush2.msra.mxu0 0.0
    %70 = vmatprep.subr.mxu0 0.0
    %71 = vmatpush2.msra.mxu0 0.0
    %72 = vmatprep.subr.mxu0 0.0
    %73 = vmatpush2.msra.mxu0 0.0
    %74 = vmatprep.subr.mxu0 0.0
    %75 = vmatpush2.msra.mxu0 0.0
    %76 = vmatprep.subr.mxu0 0.0
    %77 = vmatpush2.msra.mxu0 0.0
    %78 = vmatprep.subr.mxu0 0.0
    %79 = vmatpush2.msra.mxu0 0.0
    %80 = vmatprep.subr.mxu0 0.0
    %81 = vmatpush2.msra.mxu0 0.0
    %82 = vmatprep.subr.mxu0 0.0
    %83 = vmatpush2.msra.mxu0 0.0
    %84 = vmatprep.subr.mxu0 0.0
    %85 = vmatpush2.msra.mxu0 0.0
    %86 = vmatprep.subr.mxu0 0.0
    %87 = vmatpush2.msra.mxu0 0.0
    %88 = vmatprep.subr.mxu0 0.0
    %89 = vmatpush2.msra.mxu0 0.0
    %90 = vmatprep.subr.mxu0 0.0
    %91 = vmatpush2.msra.mxu0 0.0
    %92 = vmatprep.subr.mxu0 0.0
    %93 = vmatpush2.msra.mxu0 0.0
    %94 = vmatprep.subr.mxu0 0.0
    %95 = vmatpush2.msra.mxu0 0.0
    %96 = vmatprep.mubr.f32.mxu0 0.0
    %97 = vmatmul.mubr.f32.gmra.mxu0 %v15
    %v98 = vpop.f32.mrf.mxu0
    %v99 = vadd.f32 0.0, %v98
    %v100 = vpop.f32.mrf.mxu0
    %101 = vdwg.mxu0
    %v102 = vld [vmem:[%s2] sm:$0xff]
    %v103 = vld [vmem:[%s2 + $0x8] sm:$0xff]
    %v104 = vld [vmem:[%s2 + $0x10] sm:$0xff]
    %v105 = vld [vmem:[%s2 + $0x18] sm:$0xff]
    %v106 = vld [vmem:[%s2 + $0x20] sm:$0xff]
    %v107 = vld [vmem:[%s2 + $0x28] sm:$0xff]
    %v108 = vld [vmem:[%s2 + $0x30] sm:$0xff]
    %v109 = vld [vmem:[%s2 + $0x38] sm:$0xff]
    %v110 = vld [vmem:[%s2 + $0x40] sm:$0xff]
    %v111 = vld [vmem:[%s2 + $0x48] sm:$0xff]
    %v112 = vld [vmem:[%s2 + $0x50] sm:$0xff]
    %v113 = vld [vmem:[%s2 + $0x58] sm:$0xff]
    %v114 = vld [vmem:[%s2 + $0x60] sm:$0xff]
    %v115 = vld [vmem:[%s2 + $0x68] sm:$0xff]
    %v116 = vld [vmem:[%s2 + $0x70] sm:$0xff]
    %v117 = vld [vmem:[%s2 + $0x78] sm:$0xff]
    %118 = vmatprep.subr.mxu0 0.0
    %119 = vmatpush1.msra.mxu0 %v117
    %120 = vmatprep.subr.mxu0 0.0
    %121 = vmatpush1.msra.mxu0 %v116
    %122 = vmatprep.subr.mxu0 0.0
    %123 = vmatpush1.msra.mxu0 %v115
    %124 = vmatprep.subr.mxu0 0.0
    %125 = vmatpush1.msra.mxu0 %v114
    %126 = vmatprep.subr.mxu0 0.0
    %127 = vmatpush1.msra.mxu0 %v113
    %128 = vmatprep.subr.mxu0 0.0
    %129 = vmatpush1.msra.mxu0 %v112
    %130 = vmatprep.subr.mxu0 0.0
    %131 = vmatpush1.msra.mxu0 %v111
    %132 = vmatprep.subr.mxu0 0.0
    %133 = vmatpush1.msra.mxu0 %v110
    %134 = vmatprep.subr.mxu0 0.0
    %135 = vmatpush1.msra.mxu0 %v109
    %136 = vmatprep.subr.mxu0 0.0
    %137 = vmatpush1.msra.mxu0 %v108
    %138 = vmatprep.subr.mxu0 0.0
    %139 = vmatpush1.msra.mxu0 %v107
    %140 = vmatprep.subr.mxu0 0.0
    %141 = vmatpush1.msra.mxu0 %v106
    %142 = vmatprep.subr.mxu0 0.0
    %143 = vmatpush1.msra.mxu0 %v105
    %144 = vmatprep.subr.mxu0 0.0
    %145 = vmatpush1.msra.mxu0 %v104
    %146 = vmatprep.subr.mxu0 0.0
    %147 = vmatpush1.msra.mxu0 %v103
    %148 = vmatprep.subr.mxu0 0.0
    %149 = vmatpush1.msra.mxu0 %v102
    %150 = vmatprep.subr.mxu0 0.0
    %151 = vmatpush2.msra.mxu0 0.0
    %152 = vmatprep.subr.mxu0 0.0
    %153 = vmatpush2.msra.mxu0 0.0
    %154 = vmatprep.subr.mxu0 0.0
    %155 = vmatpush2.msra.mxu0 0.0
    %156 = vmatprep.subr.mxu0 0.0
    %157 = vmatpush2.msra.mxu0 0.0
    %158 = vmatprep.subr.mxu0 0.0
    %159 = vmatpush2.msra.mxu0 0.0
    %160 = vmatprep.subr.mxu0 0.0
    %161 = vmatpush2.msra.mxu0 0.0
    %162 = vmatprep.subr.mxu0 0.0
    %163 = vmatpush2.msra.mxu0 0.0
    %164 = vmatprep.subr.mxu0 0.0
    %165 = vmatpush2.msra.mxu0 0.0
    %166 = vmatprep.subr.mxu0 0.0
    %167 = vmatpush2.msra.mxu0 0.0
    %168 = vmatprep.subr.mxu0 0.0
    %169 = vmatpush2.msra.mxu0 0.0
    %170 = vmatprep.subr.mxu0 0.0
    %171 = vmatpush2.msra.mxu0 0.0
    %172 = vmatprep.subr.mxu0 0.0
    %173 = vmatpush2.msra.mxu0 0.0
    %174 = vmatprep.subr.mxu0 0.0
    %175 = vmatpush2.msra.mxu0 0.0
    %176 = vmatprep.subr.mxu0 0.0
    %177 = vmatpush2.msra.mxu0 0.0
    %178 = vmatprep.subr.mxu0 0.0
    %179 = vmatpush2.msra.mxu0 0.0
    %180 = vmatprep.subr.mxu0 0.0
    %181 = vmatpush2.msra.mxu0 0.0
    %182 = vmatprep.mubr.f32.mxu0 0.0
    %183 = vmatmul.mubr.f32.gmra.mxu0 %v99
    %v184 = vpop.f32.mrf.mxu0
    %v185 = vadd.f32 0.0, %v184
    %v186 = vpop.f32.mrf.mxu0
    %187 = vdwg.mxu0
    %188 = vst [vmem:[#allocation2] sm:$0xff] %v185
    // Predicated region
    $region14: #{multipathway_net_forward.1} parent=1 // pred_check
      _
    $region15: #{multipathway_net_forward.1} parent=1 // pred_check_branch
      %190 = sbr.rel (0) target = $region17
    $region16: #{multipathway_net_forward.1} parent=1 // pred_region
      %s192 = ssub.s32 128, 128
      %193 = vsyncadd [#allocation3], %s192
      %s195 = sshll.u32 [#allocation2], 4
      %s196 = int_to_ptr.vmem [resolvable:$true] %s195
      %198 = dma.vmem_to_hbm [thread:$0]  %s196, 128, %s3, [#allocation3]
    $region17: #{multipathway_net_forward.1} parent=1 // pred_fallthru
      _
    // Predicated region
    $region18: #{multipathway_net_forward.1} parent=1 // pred_check
      _
    $region19: #{multipathway_net_forward.1} parent=1 // pred_check_branch
      %200 = sbr.rel (0) target = $region21
    $region20: #{multipathway_net_forward.1} parent=1 // pred_region
      %201 = dma.done [#allocation3], 128
    $region21: #{multipathway_net_forward.1} parent=1 // pred_fallthru
      _
    %202 = vsyncpa [#allocation3], 1

</llo_original>
